<compile_context>
chip_gen: v7x
topology: tpu7x:2x2x1
jax: 0.10.0
libtpu: 0.0.40
codegen_flags: <defaults>
</compile_context>

<pallas_src>
import functools
import math

import jax
import jax.numpy as jnp
from jax.experimental import pallas as pl
from jax.experimental.pallas import tpu as pltpu


def _round_up(x, m):
    return ((x + m - 1) // m) * m


def _padded_f32_bytes(rows, cols):
    """f32 VMEM footprint of a (rows, cols) slab after (8, 128) tiling."""
    return _round_up(rows, 8) * _round_up(cols, 128) * 4


def _vmem_capacity_bytes():
    """Physical VMEM per core, with a conservative (v7x-sized) fallback."""
    try:
        cap = int(getattr(pltpu.get_tpu_info(), "vmem_capacity_bytes", 0))
        if cap > (16 << 20):
            return cap
    except Exception:
        pass
    return 64 << 20


# ---------------------------------------------------------------------------
# Path 1: whole tensor resident in VMEM (single HBM read).
# ---------------------------------------------------------------------------
def _resident_kernel(sim_ref, w_ref, b_ref, bn_ref, out_ref):
    # sim_ref: (B, L, D) VMEM    w_ref: (1, D) VMEM
    # b_ref:   (1,) SMEM         bn_ref: (2,) SMEM (gamma, beta)
    _, _, D = sim_ref.shape
    sim = sim_ref[...]
    w = w_ref[...].reshape(1, 1, D)

    # Linear(sim_dim -> 1): lane-axis reduce, kept in (B, L, 1) layout so the
    # later broadcast against sim is a cheap lane broadcast (no relayout).
    logits = jnp.sum(sim * w, axis=-1, keepdims=True) + b_ref[0]      # (B, L, 1)

    # BatchNorm1d(1), training-mode stats over all B*L logits (two-pass).
    mean = jnp.mean(logits)
    var = jnp.mean((logits - mean) ** 2)                              # biased
    scale = bn_ref[0] / jnp.sqrt(var + 1e-5)
    shift = bn_ref[1] - mean * scale
    attn = jax.nn.sigmoid(logits * scale + shift)                     # (B, L, 1)

    # L1 norm over L dropped: a positive per-row scale cancels (to ~1e-8 eps)
    # in the final L2 normalization, so it is dead work.
    # Weighted sum over L on the VPU (broadcast-mul + sublane reduce) instead
    # of B tiny (1,L)x(L,D) MXU matmuls.
    saf = jnp.sum(attn * sim, axis=1)                                 # (B, D)

    # Exact L2 normalization (matches reference eps placement).
    norm = jnp.sqrt(jnp.sum(saf * saf, axis=-1, keepdims=True)) + 1e-8
    out_ref[...] = saf / norm


def _resident_forward(sim_emb, w, b, bn_params, vmem_limit):
    B, L, D = sim_emb.shape
    return pl.pallas_call(
        _resident_kernel,
        out_shape=jax.ShapeDtypeStruct((B, D), jnp.float32),
        in_specs=[
            # Whole-array VMEM residency (no grid => single copy, no double
            # buffering), which is what the eligibility estimate assumes.
            pl.BlockSpec(memory_space=pltpu.MemorySpace.VMEM),   # sim_emb
            pl.BlockSpec(memory_space=pltpu.MemorySpace.VMEM),   # w
            pl.BlockSpec(memory_space=pltpu.MemorySpace.SMEM),   # bias
            pl.BlockSpec(memory_space=pltpu.MemorySpace.SMEM),   # gamma/beta
        ],
        out_specs=pl.BlockSpec(memory_space=pltpu.MemorySpace.VMEM),
        compiler_params=pltpu.CompilerParams(vmem_limit_bytes=vmem_limit),
    )(sim_emb, w, b, bn_params)


def _resident_footprint_bytes(B, L, D):
    # Single-buffered, (8,128)-padding aware.
    sim = B * _round_up(L, 8) * _round_up(D, 128) * 4
    out = _padded_f32_bytes(B, D)
    w = _padded_f32_bytes(1, D)
    return sim + out + w


# ---------------------------------------------------------------------------
# Path 2: two-phase B-tiled pipeline (global BN stats, then apply).
# ---------------------------------------------------------------------------
def _tiled_kernel(sim_ref, w_ref, b_ref, bn_ref, out_ref, sum_ref, sq_ref, *, b_real):
    # grid = (phase, b_tile); phase 0 = global BN stats, phase 1 = apply.
    p = pl.program_id(0)
    i = pl.program_id(1)
    tb, L, D = sim_ref.shape
    inv_n = 1.0 / float(b_real * L)
    w = w_ref[...].reshape(1, 1, D)

    @pl.when(p == 0)
    def _stats_phase():
        @pl.when(i == 0)
        def _init():
            sum_ref[...] = jnp.zeros_like(sum_ref)
            sq_ref[...] = jnp.zeros_like(sq_ref)

        logits = jnp.sum(sim_ref[...] * w, axis=-1) + b_ref[0]        # (tb, L)
        # Mask rows of the (possibly) ragged last B tile: data beyond B is
        # undefined (Pallas clamps the DMA), so zero it out of the stats.
        rows = jax.lax.broadcasted_iota(jnp.int32, (tb, L), 0) + i * tb
        lm = jnp.where(rows < b_real, logits, 0.0)
        sum_ref[...] += jnp.sum(lm, axis=(0, 1), keepdims=True)
        sq_ref[...] += jnp.sum(lm * lm, axis=(0, 1), keepdims=True)

    @pl.when(p == 1)
    def _apply_phase():
        mean = sum_ref[...] * inv_n                                   # (1, 1)
        # One-pass E[x^2]-E[x]^2 (clamped).  TODO(synk): switch to a two-pass /
        # Welford accumulation if |mean| >> std ever matters in practice.
        var = jnp.maximum(sq_ref[...] * inv_n - mean * mean, 0.0)     # biased
        scale = bn_ref[0] / jnp.sqrt(var + 1e-5)                      # (1, 1)
        shift = bn_ref[1] - mean * scale                              # (1, 1)
        scale3 = scale.reshape(1, 1, 1)
        shift3 = shift.reshape(1, 1, 1)

        sim = sim_ref[...]
        # Recompute the Linear here (cheap VPU/XLU work hidden under the tile
        # DMA) instead of caching a lane-padded (B, L) logits slab in VMEM.
        logits = jnp.sum(sim * w, axis=-1, keepdims=True) + b_ref[0]  # (tb, L, 1)
        attn = jax.nn.sigmoid(logits * scale3 + shift3)               # (tb, L, 1)
        # (L1 normalization dropped: cancels in the final L2 norm.)
        saf = jnp.sum(attn * sim, axis=1)                             # (tb, D)
        norm = jnp.sqrt(jnp.sum(saf * saf, axis=-1, keepdims=True)) + 1e-8
        out_ref[...] = saf / norm


def _tiled_forward(sim_emb, w, b, bn_params, cap, block_b):
    B, L, D = sim_emb.shape
    # Per-batch-row VMEM cost of the streaming buffers, (8,128)-padding aware:
    # double-buffered sim tile + double-buffered out tile.
    per_row = (2 * _round_up(L, 8) * _round_up(D, 128) + 2 * _round_up(D, 128)) * 4
    if block_b is None:
        # Spend ~45% of VMEM on streaming buffers; large tiles keep per-step
        # overhead (~0.35us) amortized and per-tile DMAs well above the
        # roofline knee (important on v5e).
        block_b = int(cap * 0.45) // per_row
    max_tb = max(1, int(cap * 0.7) // per_row)
    tb = max(1, min(block_b, max_tb, B))
    if tb < B:
        tb = max(8, (tb // 8) * 8)   # output-tile second-to-last dim must be %8
        tb = min(tb, B)              # if this lands on B, one full block is fine
    nb = pl.cdiv(B, tb)              # ragged last tile handled in-kernel (no jnp.pad)
    # TODO(synk): rows whose L*D slab no longer fits VMEM would also need tiling over L.
    # TODO(synk): optionally stream sim_emb as bf16 (keep stats/accum in f32) for ~2x HBM.

    needed = tb * per_row + 16 * _round_up(D, 128) * 4 + (8 << 20)
    vmem_limit = max(32 << 20, min(int(cap * 0.9), needed))

    return pl.pallas_call(
        functools.partial(_tiled_kernel, b_real=B),
        out_shape=jax.ShapeDtypeStruct((B, D), jnp.float32),
        grid_spec=pltpu.PrefetchScalarGridSpec(
            num_scalar_prefetch=0,
            grid=(2, nb),                       # (phase, B tile); phase outermost
            in_specs=[
                pl.BlockSpec((tb, L, D), lambda p, i: (i, 0, 0)),
                pl.BlockSpec((1, D), lambda p, i: (0, 0)),
                pl.BlockSpec(memory_space=pltpu.MemorySpace.SMEM),
                pl.BlockSpec(memory_space=pltpu.MemorySpace.SMEM),
            ],
            # During the stats phase (p == 0) the output block index is pinned
            # to 0, so no garbage tiles are written back to HBM; the apply
            # phase (p == 1) walks the real output tiles.  OOB rows of the
            # ragged last tile are dropped by the masked output store.
            out_specs=pl.BlockSpec((tb, D), lambda p, i: (p * i, 0)),
            scratch_shapes=[
                pltpu.VMEM((1, 1), jnp.float32),   # sum(logits)
                pltpu.VMEM((1, 1), jnp.float32),   # sum(logits**2)
            ],
        ),
        compiler_params=pltpu.CompilerParams(
            # Sequential: the apply phase depends on the stats-phase scratch.
            # TODO(synk): on v7x, split into two pallas_calls (stats / apply)
            # with the B-tile axis "parallel" so both TensorCores are used.
            dimension_semantics=("arbitrary", "arbitrary"),
            vmem_limit_bytes=vmem_limit,
        ),
    )(sim_emb, w, b, bn_params)


# ---------------------------------------------------------------------------
# Public wrapper: size-dispatch between the two paths.
# ---------------------------------------------------------------------------
def attention_filtration(sim_emb, w, b, bn_params, *, block_b=None, force_tiled=False):
    """sim_emb: (B, L, D) f32; w: (1, D); b: (1,); bn_params: (2,) [gamma, beta] -> (B, D)."""
    B, L, D = sim_emb.shape
    cap = _vmem_capacity_bytes()
    # Single-buffered resident footprint (whole-array VMEM specs, no pipeline),
    # so eligibility scales close to physical VMEM instead of half of it.
    resident_bytes = _resident_footprint_bytes(B, L, D)
    if not force_tiled and resident_bytes + (8 << 20) <= int(cap * 0.9):
        vmem_limit = max(32 << 20, min(int(cap * 0.95), resident_bytes + (16 << 20)))
        return _resident_forward(sim_emb, w, b, bn_params, vmem_limit)
    return _tiled_forward(sim_emb, w, b, bn_params, cap, block_b)


# ---------------------------------------------------------------------------
# Pure-JAX reference mirroring the PyTorch forward (training-mode BN).
# ---------------------------------------------------------------------------
def reference(sim_emb, w, b, bn_params):
    gamma, beta = bn_params[0], bn_params[1]
    logits = jnp.einsum("bld,od->blo", sim_emb, w) + b        # (B, L, 1)
    x = jnp.transpose(logits, (0, 2, 1))                      # (B, 1, L)
    mean = jnp.mean(x)
    var = jnp.mean((x - mean) ** 2)
    xn = (x - mean) / jnp.sqrt(var + 1e-5) * gamma + beta
    attn = jax.nn.sigmoid(xn)
    attn = attn / (jnp.sum(jnp.abs(attn), axis=-1, keepdims=True) + 1e-8)
    saf = jnp.matmul(attn, sim_emb)[:, 0, :]                  # (B, D)
    return saf / (jnp.sqrt(jnp.sum(saf ** 2, axis=-1, keepdims=True)) + 1e-8)


if __name__ == "__main__":
    key = jax.random.PRNGKey(0)
    kx1, kw1, kx2, kw2 = jax.random.split(key, 4)

    # --- Case 1: small problem -> resident single-HBM-read path --------------
    B, L, D = 2, 8, 32
    sim1 = jax.random.normal(kx1, (B, L, D), dtype=jnp.float32)
    # Deterministic init matching AttentionFiltration.init_weights():
    #   Linear: uniform(-r, r), r = sqrt(6)/sqrt(in+out), bias = 0
    #   BatchNorm1d: gamma = 1, beta = 0
    r = math.sqrt(6.0) / math.sqrt(D + 1)
    w1 = jax.random.uniform(kw1, (1, D), jnp.float32, -r, r)
    b1 = jnp.zeros((1,), jnp.float32)
    bn1 = jnp.array([1.0, 0.0], jnp.float32)

    out1 = jax.block_until_ready(attention_filtration(sim1, w1, b1, bn1))
    ref1 = reference(sim1, w1, b1, bn1)
    assert out1.shape == (B, D)
    assert jnp.allclose(out1, ref1, atol=1e-3, rtol=1e-3), "resident path mismatch"

    # --- Case 2: forced two-phase tiled path (multi-tile + ragged last tile) -
    B2, L2, D2 = 20, 10, 32
    sim2 = jax.random.normal(kx2, (B2, L2, D2), dtype=jnp.float32)
    r2 = math.sqrt(6.0) / math.sqrt(D2 + 1)
    w2 = jax.random.uniform(kw2, (1, D2), jnp.float32, -r2, r2)
    b2 = jnp.full((1,), 0.05, jnp.float32)
    bn2 = jnp.array([1.3, -0.2], jnp.float32)   # non-trivial gamma/beta

    out2 = jax.block_until_ready(
        attention_filtration(sim2, w2, b2, bn2, block_b=8, force_tiled=True))
    ref2 = reference(sim2, w2, b2, bn2)
    assert out2.shape == (B2, D2)
    assert jnp.allclose(out2, ref2, atol=1e-3, rtol=1e-3), "tiled path mismatch"

    print("KERNEL_OK")
</pallas_src>

<mosaic_0001>
module attributes {stable_mosaic.version = 11 : i64} {
  func.func @_resident_kernel(%arg0: memref<2x8x32xf32, #tpu.memory_space<vmem>>, %arg1: memref<1x32xf32, #tpu.memory_space<vmem>>, %arg2: memref<1xf32, #tpu.memory_space<smem>>, %arg3: memref<2xf32, #tpu.memory_space<smem>>, %arg4: memref<2x32xf32, #tpu.memory_space<vmem>>) attributes {dimension_semantics = [], scalar_prefetch = 0 : i64, scratch_operands = 0 : i64, tpu.core_type = #tpu.core_type<tc>} {
    %c0 = arith.constant 0 : index
    %c0_0 = arith.constant 0 : index
    %c0_1 = arith.constant 0 : index
    %0 = vector.load %arg0[%c0, %c0_0, %c0_1] : memref<2x8x32xf32, #tpu.memory_space<vmem>>, vector<2x8x32xf32>
    %c0_2 = arith.constant 0 : index
    %c0_3 = arith.constant 0 : index
    %1 = vector.load %arg1[%c0_2, %c0_3] : memref<1x32xf32, #tpu.memory_space<vmem>>, vector<1x32xf32>
    %2 = vector.shape_cast %1 : vector<1x32xf32> to vector<1x1x32xf32>
    %3 = vector.broadcast %2 : vector<1x1x32xf32> to vector<2x8x32xf32>
    %4 = arith.mulf %0, %3 : vector<2x8x32xf32>
    %cst = arith.constant dense<0.000000e+00> : vector<2x8xf32>
    %5 = vector.multi_reduction <add>, %4, %cst [2] : vector<2x8x32xf32> to vector<2x8xf32>
    %6 = vector.shape_cast %5 : vector<2x8xf32> to vector<2x8x1xf32>
    %c0_4 = arith.constant 0 : index
    %7 = memref.load %arg2[%c0_4] : memref<1xf32, #tpu.memory_space<smem>>
    %8 = vector.broadcast %7 : f32 to vector<2x8x1xf32>
    %9 = arith.addf %6, %8 : vector<2x8x1xf32>
    %10 = vector.shape_cast %9 : vector<2x8x1xf32> to vector<1x2x8x1xf32>
    %cst_5 = arith.constant dense<0.000000e+00> : vector<1xf32>
    %11 = vector.multi_reduction <add>, %10, %cst_5 [1, 2, 3] : vector<1x2x8x1xf32> to vector<1xf32>
    %12 = vector.shape_cast %11 : vector<1xf32> to vector<1x1x1x1xf32>
    %13 = vector.extract %12[0, 0, 0, 0] : f32 from vector<1x1x1x1xf32>
    %cst_6 = arith.constant 1.600000e+01 : f32
    %14 = arith.divf %13, %cst_6 : f32
    %15 = vector.broadcast %14 : f32 to vector<2x8x1xf32>
    %16 = arith.subf %9, %15 : vector<2x8x1xf32>
    %17 = arith.mulf %16, %16 : vector<2x8x1xf32>
    %18 = vector.shape_cast %17 : vector<2x8x1xf32> to vector<1x2x8x1xf32>
    %cst_7 = arith.constant dense<0.000000e+00> : vector<1xf32>
    %19 = vector.multi_reduction <add>, %18, %cst_7 [1, 2, 3] : vector<1x2x8x1xf32> to vector<1xf32>
    %20 = vector.shape_cast %19 : vector<1xf32> to vector<1x1x1x1xf32>
    %21 = vector.extract %20[0, 0, 0, 0] : f32 from vector<1x1x1x1xf32>
    %cst_8 = arith.constant 1.600000e+01 : f32
    %22 = arith.divf %21, %cst_8 : f32
    %c0_9 = arith.constant 0 : index
    %23 = memref.load %arg3[%c0_9] : memref<2xf32, #tpu.memory_space<smem>>
    %cst_10 = arith.constant 9.99999974E-6 : f32
    %24 = arith.addf %22, %cst_10 : f32
    %25 = math.sqrt %24 : f32
    %26 = arith.divf %23, %25 : f32
    %c1 = arith.constant 1 : index
    %27 = memref.load %arg3[%c1] : memref<2xf32, #tpu.memory_space<smem>>
    %28 = arith.mulf %14, %26 : f32
    %29 = arith.subf %27, %28 : f32
    %30 = vector.broadcast %26 : f32 to vector<2x8x1xf32>
    %31 = arith.mulf %9, %30 : vector<2x8x1xf32>
    %32 = vector.broadcast %29 : f32 to vector<2x8x1xf32>
    %33 = arith.addf %31, %32 : vector<2x8x1xf32>
    %34 = arith.negf %33 : vector<2x8x1xf32>
    %35 = math.exp %34 : vector<2x8x1xf32>
    %cst_11 = arith.constant 1.000000e+00 : f32
    %36 = vector.broadcast %cst_11 : f32 to vector<2x8x1xf32>
    %37 = arith.addf %36, %35 : vector<2x8x1xf32>
    %38 = arith.divf %36, %37 : vector<2x8x1xf32>
    %39 = vector.broadcast %38 : vector<2x8x1xf32> to vector<2x8x32xf32>
    %40 = arith.mulf %39, %0 : vector<2x8x32xf32>
    %cst_12 = arith.constant dense<0.000000e+00> : vector<2x32xf32>
    %41 = vector.multi_reduction <add>, %40, %cst_12 [1] : vector<2x8x32xf32> to vector<2x32xf32>
    %42 = arith.mulf %41, %41 : vector<2x32xf32>
    %cst_13 = arith.constant dense<0.000000e+00> : vector<2xf32>
    %43 = vector.multi_reduction <add>, %42, %cst_13 [1] : vector<2x32xf32> to vector<2xf32>
    %44 = vector.shape_cast %43 : vector<2xf32> to vector<2x1xf32>
    %45 = math.sqrt %44 : vector<2x1xf32>
    %cst_14 = arith.constant 9.99999993E-9 : f32
    %46 = vector.broadcast %cst_14 : f32 to vector<2x1xf32>
    %47 = arith.addf %45, %46 : vector<2x1xf32>
    %48 = vector.broadcast %47 : vector<2x1xf32> to vector<2x32xf32>
    %49 = arith.divf %41, %48 : vector<2x32xf32>
    %c0_15 = arith.constant 0 : index
    %c0_16 = arith.constant 0 : index
    %50 = vector.load %arg4[%c0_15, %c0_16] : memref<2x32xf32, #tpu.memory_space<vmem>>, vector<2x32xf32>
    tpu.vector_store %arg4[%c0_15, %c0_16], %49 {strides = array<i32>} : memref<2x32xf32, #tpu.memory_space<vmem>>, vector<2x32xf32>,
    return
  }
}

</mosaic_0001>

<llo_original>
// kernel: tpu_custom_call.1
$region0: #{tpu_custom_call.1}
  #allocation0 [shape = 'u32[]', space=smem, size = 0x4, offset = 0x4, fixed_abs, tag = 'smem constant byte address 0x4 - core index']
  #allocation1 [shape = 'u32[144,128]{1,0:T(1,128)}', space=vmem, size = 0x12000, scoped, tag = 'internal scratch']
  #allocation2 [shape = 'f32[1]{0:T(128)S(6)}', space=smem, size = 0x200, scoped, tag = 'scoped memory for tpu_custom_call.1']
  %s0 = inlined_call_operand.hbm [shape: f32[2,8,32], index: 0, kind: input, shape index: {}]
  %s1 = inlined_call_operand.vmem [shape: f32[1,32], index: 1, kind: input, shape index: {}]
  %s2 = inlined_call_operand.<no memory space> [shape: f32[1], index: 2, kind: input, shape index: {}]
  %s3 = inlined_call_operand.vmem [shape: f32[2], index: 3, kind: input, shape index: {}]
  %s4 = inlined_call_operand.hbm [shape: f32[2,32], index: 4, kind: output, shape index: {}]
  %s5 = sld [smem:[#allocation0]]
  $region34: #{tpu_custom_call.1} parent=0
    _
  %s7 = ssub.s32 1, %s5
  %s8 = scalar_select 0, %s7, %s5
  %9 = sst [smem:[#allocation2]] %s2
  $region1: #{tpu_custom_call.1} parent=0
    #allocation3 [shape = 'u8[8192]{0}', space=vmem, size = 0x2000, scoped, tag = 'input window, operand 0, single buffered']
    #allocation4 [shape = 's32[1]{0}', space=sflag, size = 0x4, scoped, tag = 'scoped memory for tpu_custom_call.1']
    #allocation5 [shape = 's32[1]{0}', space=sflag, size = 0x4, scoped, tag = 'scoped memory for tpu_custom_call.1']
    #allocation6 [shape = 's32[1]{0}', space=sflag, size = 0x4, scoped, tag = 'scoped memory for tpu_custom_call.1']
    #allocation7 [shape = 'u8[512]{0}', space=smem, size = 0x200, scoped, tag = 'input window, operand 3, single buffered']
    #allocation8 [shape = 'u8[1024]{0}', space=vmem, size = 0x400, scoped, tag = 'output window, operand 0, single buffered']
    %10 = vsyncpa [#allocation4], 0
    %11 = vsyncpa [#allocation6], 0
    %12 = vsyncpa [#allocation5], 0
    // Predicated region
    $region2: #{tpu_custom_call.1} parent=1 // pred_check
      _
    $region3: #{tpu_custom_call.1} parent=1 // pred_check_branch
      %14 = sbr.rel (0) target = $region5
    $region4: #{tpu_custom_call.1} parent=1 // pred_region
      %s16 = ssub.s32 256, 256
      %17 = vsyncadd [#allocation4], %s16
      %s18 = sshll.u32 [#allocation3], 4
      %s19 = int_to_ptr.vmem [resolvable:$true] %s18
      %24 = dma.hbm_to_vmem [thread:$0]  %s0, 256, %s19, [#allocation4], 128, 128, 8
    $region5: #{tpu_custom_call.1} parent=1 // pred_fallthru
      _
    // Predicated region
    $region6: #{tpu_custom_call.1} parent=1 // pred_check
      _
    $region7: #{tpu_custom_call.1} parent=1 // pred_check_branch
      %26 = sbr.rel (0) target = $region9
    $region8: #{tpu_custom_call.1} parent=1 // pred_region
      _
    $region9: #{tpu_custom_call.1} parent=1 // pred_fallthru
      _
    // Predicated region
    $region10: #{tpu_custom_call.1} parent=1 // pred_check
      _
    $region11: #{tpu_custom_call.1} parent=1 // pred_check_branch
      %28 = sbr.rel (0) target = $region13
    $region12: #{tpu_custom_call.1} parent=1 // pred_region
      _
    $region13: #{tpu_custom_call.1} parent=1 // pred_fallthru
      _
    // Predicated region
    $region14: #{tpu_custom_call.1} parent=1 // pred_check
      _
    $region15: #{tpu_custom_call.1} parent=1 // pred_check_branch
      %30 = sbr.rel (0) target = $region17
    $region16: #{tpu_custom_call.1} parent=1 // pred_region
      %s32 = ssub.s32 16, 16
      %33 = vsyncadd [#allocation6], %s32
      %s35 = sshll.u32 %s3, 4
      %s36 = int_to_ptr.vmem [resolvable:$true] %s35
      %38 = dma.vmem_to_smem %s36, 16, [#allocation7], [#allocation6]
    $region17: #{tpu_custom_call.1} parent=1 // pred_fallthru
      _
    // Predicated region
    $region18: #{tpu_custom_call.1} parent=1 // pred_check
      _
    $region19: #{tpu_custom_call.1} parent=1 // pred_check_branch
      %40 = sbr.rel (0) target = $region21
    $region20: #{tpu_custom_call.1} parent=1 // pred_region
      %41 = dma.done [#allocation4], 256
    $region21: #{tpu_custom_call.1} parent=1 // pred_fallthru
      _
    // Predicated region
    $region22: #{tpu_custom_call.1} parent=1 // pred_check
      _
    $region23: #{tpu_custom_call.1} parent=1 // pred_check_branch
      %43 = sbr.rel (0) target = $region25
    $region24: #{tpu_custom_call.1} parent=1 // pred_region
      %44 = dma.done [#allocation6], 16
    $region25: #{tpu_custom_call.1} parent=1 // pred_fallthru
      _
    %45 = sfence
    %v46 = vld [vmem:[#allocation3] sm:$0xff]
    %v47 = vld [vmem:[#allocation3 + $0x8] sm:$0xff]
    %v48 = vld [vmem:[%s1] sm:$0x1]
    %v50 = vlaneseq
    %v51 = vshrl.u32 %v50, 7
    %v52 = vsub.s32 0, %v51
    %v53 = vrot.slane %v48, %v52
    %v55 = vmul.f32 %v46, %v53
    %v56 = vmul.f32 %v47, %v53
    %vm57 = vcmask 261120
    %v58 = vsel %vm57, %v55, 0.0
    %59 = vadd.xlane.f32.xlu0 %v58
    %v60 = vpop.xlane.xlu0 %59
    %v61 = vsel %vm57, %v56, 0.0
    %62 = vadd.xlane.f32.xlu0 %v61
    %v63 = vpop.xlane.xlu0 %62
    %s64 = sld [smem:[#allocation2]]
    %v65 = vstv %s64
    %v66 = vadd.f32 %v60, %v65
    %v67 = vadd.f32 %v63, %v65
    %vm68 = vcmask 7168
    %v69 = vsel %vm68, %v66, 0.0
    %v70 = vsel %vm68, %v67, 0.0
    %v71 = vadd.f32 %v69, %v70
    %72 = vadd.xlane.f32.xlu0 %v71
    %v73 = vpop.xlane.xlu0 %72
    %v74 = vrot.slane %v73, 4
    %v75 = vadd.f32 %v73, %v74
    %v76 = vrot.slane %v75, 2
    %v77 = vadd.f32 %v75, %v76
    %v78 = vrot.slane %v77, 1
    %v79 = vadd.f32 %v77, %v78
    %s80 = vtos %v79
    %v81 = vrcp.pop 16.0
    %s82 = vtos %v81
    %s83 = smul.f32 %s80, %s82
    %v84 = vstv %s83
    %v85 = vsub.f32 %v66, %v84
    %v86 = vsub.f32 %v67, %v84
    %v87 = vmul.f32 %v85, %v85
    %v88 = vmul.f32 %v86, %v86
    %v89 = vsel %vm68, %v87, 0.0
    %v90 = vsel %vm68, %v88, 0.0
    %v91 = vadd.f32 %v89, %v90
    %92 = vadd.xlane.f32.xlu0 %v91
    %v93 = vpop.xlane.xlu0 %92
    %v94 = vrot.slane %v93, 4
    %v95 = vadd.f32 %v93, %v94
    %v96 = vrot.slane %v95, 2
    %v97 = vadd.f32 %v95, %v96
    %v98 = vrot.slane %v97, 1
    %v99 = vadd.f32 %v97, %v98
    %s100 = vtos %v99
    %v101 = vrcp.pop 16.0
    %s102 = vtos %v101
    %s103 = smul.f32 %s100, %s102
    %s104 = sld [smem:[#allocation7]]
    %s105 = sadd.f32 %s103, 1e-05
    %v106 = vstv %s105
    %v107 = vrsqrt.pop %v106
    %v108 = vmul.f32 %v106, %v107
    %vm109 = vcmp.eq.f32.partialorder %v106, inf
    %v110 = vsel %vm109, %v106, %v108
    %vm111 = vcmp.eq.f32.partialorder %v106, 0.0
    %v112 = vand.u32 %v106, 2147483648
    %v113 = vsel %vm111, %v112, %v110
    %s114 = vtos %v113
    %v115 = vstv %s114
    %v116 = vrcp.pop %v115
    %s117 = vtos %v116
    %s118 = smul.f32 %s104, %s117
    %s119 = sld [smem:[#allocation7 + $0x1]]
    %s120 = smul.f32 %s83, %s118
    %s121 = ssub.f32 %s119, %s120
    %v122 = vstv %s118
    %v123 = vmul.f32 %v66, %v122
    %v124 = vmul.f32 %v67, %v122
    %v125 = vstv %s121
    %v126 = vadd.f32 %v123, %v125
    %v127 = vadd.f32 %v124, %v125
    %v128 = vxor.u32 %v126, 2147483648
    %v129 = vxor.u32 %v127, 2147483648
    %v130 = vmul.f32 %v128, 1.442695
    %v131 = vpow.pop %v130
    %v132 = vmul.f32 %v129, 1.442695
    %v133 = vpow.pop %v132
    %v134 = vadd.f32 %v131, 1.0
    %v135 = vadd.f32 %v133, 1.0
    %v136 = vrcp.pop %v134
    %v137 = vmul.f32 1.0, %v136
    %v138 = vrcp.pop %v135
    %v139 = vmul.f32 1.0, %v138
    %v140 = vmul.f32 %v137, %v46
    %v141 = vmul.f32 %v139, %v47
    %v142 = vsel %vm57, %v140, 0.0
    %v143 = vrot.slane %v142, 4
    %v144 = vadd.f32 %v142, %v143
    %v145 = vrot.slane %v144, 2
    %v146 = vadd.f32 %v144, %v145
    %v147 = vrot.slane %v146, 1
    %v148 = vadd.f32 %v146, %v147
    %v149 = vsel %vm57, %v141, 0.0
    %v150 = vrot.slane %v149, 4
    %v151 = vadd.f32 %v149, %v150
    %v152 = vrot.slane %v151, 2
    %v153 = vadd.f32 %v151, %v152
    %v154 = vrot.slane %v153, 1
    %v155 = vadd.f32 %v153, %v154
    %v156 = vmul.f32 %v148, %v148
    %v157 = vmul.f32 %v155, %v155
    %vm160 = vcmask 1041409
    %v161 = vsel %vm160, %v157, %v156
    %vm163 = vcmask 254976
    %v164 = vsel %vm163, %v161, 0.0
    %165 = vadd.xlane.f32.xlu0 %v164
    %v166 = vpop.xlane.xlu0 %165
    %v167 = vrsqrt.pop %v166
    %v168 = vmul.f32 %v166, %v167
    %vm169 = vcmp.eq.f32.partialorder %v166, inf
    %v170 = vsel %vm169, %v166, %v168
    %vm171 = vcmp.eq.f32.partialorder %v166, 0.0
    %v172 = vand.u32 %v166, 2147483648
    %v173 = vsel %vm171, %v172, %v170
    %v174 = vadd.f32 %v173, 1e-08
    %v176 = vrot.slane %v174, 1
    %v179 = vrcp.pop %v174
    %v180 = vmul.f32 %v148, %v179
    %v181 = vrcp.pop %v176
    %v182 = vmul.f32 %v155, %v181
    %v185 = vrot.slane %v182, 7
    %v186 = vsel %vm160, %v185, %v180
    %188 = vst.msk [vmem:[#allocation8] sm:$0x3] %vm163, %v186
    // Predicated region
    $region26: #{tpu_custom_call.1} parent=1 // pred_check
      _
    $region27: #{tpu_custom_call.1} parent=1 // pred_check_branch
      %190 = sbr.rel (0) target = $region29
    $region28: #{tpu_custom_call.1} parent=1 // pred_region
      %s192 = ssub.s32 32, 32
      %193 = vsyncadd [#allocation5], %s192
      %s195 = sshll.u32 [#allocation8], 4
      %s196 = int_to_ptr.vmem [resolvable:$true] %s195
      %198 = dma.vmem_to_hbm [thread:$0]  %s196, 32, %s4, [#allocation5]
    $region29: #{tpu_custom_call.1} parent=1 // pred_fallthru
      _
    // Predicated region
    $region30: #{tpu_custom_call.1} parent=1 // pred_check
      _
    $region31: #{tpu_custom_call.1} parent=1 // pred_check_branch
      %200 = sbr.rel (0) target = $region33
    $region32: #{tpu_custom_call.1} parent=1 // pred_region
      %201 = dma.done [#allocation5], 32
    $region33: #{tpu_custom_call.1} parent=1 // pred_fallthru
      _
    %202 = vsyncpa [#allocation4], 1
    %203 = vsyncpa [#allocation5], 1
    %204 = vsyncpa [#allocation6], 1

</llo_original>
